<compile_context>
chip_gen: v5e
topology: v5e:2x2
jax: 0.10.0
libtpu: 0.0.40
codegen_flags: <defaults>
</compile_context>

<pallas_src>
import functools

import jax
import jax.numpy as jnp
import numpy as np
from jax.experimental import pallas as pl
from jax.experimental.pallas import tpu as pltpu

_BN_EPS = 1e-5


# ----------------------------- in-kernel helpers ------------------------------

def _bn_affine(x, g, b):
    """Training-mode BatchNorm on a (C, M) tile: batch stats over M per channel row.

    One-pass sum / sum-of-squares (biased variance, matching PyTorch); rsqrt on the EUP.
    """
    inv_m = 1.0 / x.shape[1]
    s = jnp.sum(x, axis=1, keepdims=True)
    ss = jnp.sum(x * x, axis=1, keepdims=True)
    mean = s * inv_m
    var = ss * inv_m - mean * mean
    return (x - mean) * (jax.lax.rsqrt(var + _BN_EPS) * g) + b


def _conv3x3_stride1(a, w_mat, masks, wo, m):
    """3x3 / stride-1 / pad-1 conv on a lane-dense activation a: (Cin, M) -> (Cout, M).

    Each tap is a lane rotation (XLU) of `a` times a precomputed boundary mask; the 9
    shifted taps are stacked on sublanes and contracted with one MXU matmul against the
    (Cout, 9*Cin) weight matrix (column order: kh, kw, cin).
    """
    taps = []
    for t in range(9):
        kh, kw = divmod(t, 3)
        d = (kh - 1) * wo + (kw - 1)                      # flat-index shift of this tap
        shifted = a if d == 0 else pltpu.roll(a, shift=(-d) % m, axis=1)
        taps.append(shifted * masks[t:t + 1, :])
    stacked = jnp.concatenate(taps, axis=0)               # (9*Cin, M)
    return jnp.dot(w_mat, stacked, preferred_element_type=jnp.float32)


# ----------------------------- fused block kernels ------------------------------

def _block_down_kernel(p1_ref, w1_ref, g1_ref, b1_ref, w2_ref, g2_ref, b2_ref,
                       wd_ref, gd_ref, bd_ref, mask_ref, o_ref, *, cin, wo, m):
    """First block (strided / channel-changing): conv1(im2col) + bn1 + relu + conv2 + bn2
    + downsample(1x1 conv + bn) + add + relu, all in one kernel."""
    p1 = p1_ref[...]                                       # (9*Cin, M) lane-dense patches
    masks = mask_ref[...]                                  # (9, M)

    # conv1 (3x3, stride s) as a single MXU matmul on the pre-built patches.
    y1 = jnp.dot(w1_ref[...], p1, preferred_element_type=jnp.float32)   # (Cout, M)
    a1 = jnp.maximum(_bn_affine(y1, g1_ref[...], b1_ref[...]), 0.0)

    # conv2 (3x3, stride 1) entirely in-kernel via lane rolls.
    y2 = _conv3x3_stride1(a1, w2_ref[...], masks, wo, m)
    main = _bn_affine(y2, g2_ref[...], b2_ref[...])

    # Downsample identity: the centre-tap rows of the conv1 patches ARE the
    # stride-decimated input of the 1x1/stride-s conv, so no extra operand is needed.
    xd = p1[4 * cin:5 * cin, :]                            # (Cin, M)
    yd = jnp.dot(wd_ref[...], xd, preferred_element_type=jnp.float32)
    idn = _bn_affine(yd, gd_ref[...], bd_ref[...])

    o_ref[...] = jnp.maximum(main + idn, 0.0)


def _block_plain_kernel(x_ref, w1_ref, g1_ref, b1_ref, w2_ref, g2_ref, b2_ref,
                        mask_ref, o_ref, *, wo, m):
    """Stride-1, same-channel block: both convs done in-kernel; identity = input."""
    x = x_ref[...]                                         # (C, M)
    masks = mask_ref[...]                                  # (9, M)

    y1 = _conv3x3_stride1(x, w1_ref[...], masks, wo, m)
    a1 = jnp.maximum(_bn_affine(y1, g1_ref[...], b1_ref[...]), 0.0)
    y2 = _conv3x3_stride1(a1, w2_ref[...], masks, wo, m)
    o_ref[...] = jnp.maximum(_bn_affine(y2, g2_ref[...], b2_ref[...]) + x, 0.0)


# ----------------------------- pallas_call wrappers ------------------------------

@functools.lru_cache(maxsize=None)
def _conv_masks(n, ho, wo):
    """Validity masks (9, n*ho*wo) for a 3x3 / stride-1 / pad-1 conv done as lane rolls."""
    msk = np.zeros((9, n, ho, wo), np.float32)
    ho_i = np.arange(ho)[:, None]
    wo_i = np.arange(wo)[None, :]
    for t in range(9):
        kh, kw = divmod(t, 3)
        vh = (ho_i + kh - 1 >= 0) & (ho_i + kh - 1 < ho)
        vw = (wo_i + kw - 1 >= 0) & (wo_i + kw - 1 < wo)
        msk[t] = (vh & vw).astype(np.float32)[None, :, :]
    return jnp.asarray(msk.reshape(9, n * ho * wo))


def _block_down_call(patches, p, n, ho, wo):
    m = n * ho * wo
    cout = p["w1m"].shape[0]
    kernel = functools.partial(_block_down_kernel, cin=p["cin"], wo=wo, m=m)
    return pl.pallas_call(
        kernel,
        out_shape=jax.ShapeDtypeStruct((cout, m), jnp.float32),
    )(patches, p["w1m"], p["g1c"], p["b1c"], p["w2m"], p["g2c"], p["b2c"],
      p["wdm"], p["gdc"], p["bdc"], _conv_masks(n, ho, wo))


def _block_plain_call(act, p, n, ho, wo):
    m = n * ho * wo
    cout = p["w1m"].shape[0]
    kernel = functools.partial(_block_plain_kernel, wo=wo, m=m)
    return pl.pallas_call(
        kernel,
        out_shape=jax.ShapeDtypeStruct((cout, m), jnp.float32),
    )(act, p["w1m"], p["g1c"], p["b1c"], p["w2m"], p["g2c"], p["b2c"],
      _conv_masks(n, ho, wo))


# ------------------------------ host-side glue ------------------------------

def _im2col_T(x_nchw, stride):
    """3x3 / pad-1 im2col in transposed, lane-dense layout: (9*C, N*Ho*Wo).

    Only used for the layer's first (strided) conv; all other convs are done in-kernel.
    Row order is (kh, kw, c); column order is (n, ho, wo).
    """
    n, c, h, w = x_nchw.shape
    pad = 1
    xp = jnp.pad(x_nchw, ((0, 0), (0, 0), (pad, pad), (pad, pad)))
    ho = (h + 2 * pad - 3) // stride + 1
    wo = (w + 2 * pad - 3) // stride + 1
    taps = []
    for kh in range(3):
        for kw in range(3):
            taps.append(xp[:, :, kh:kh + stride * (ho - 1) + 1:stride,
                               kw:kw + stride * (wo - 1) + 1:stride])
    p = jnp.stack(taps, axis=0)                       # (9, N, C, Ho, Wo)
    p = jnp.transpose(p, (0, 2, 1, 3, 4))             # (9, C, N, Ho, Wo)
    return p.reshape(9 * c, n * ho * wo), (n, ho, wo)


def resnet_layer_forward(x_nchw, layer_params):
    p0 = layer_params[0]
    if p0["has_downsample"]:
        patches, (n, ho, wo) = _im2col_T(x_nchw, p0["stride"])
        act = _block_down_call(patches, p0, n, ho, wo)
    else:
        n, c, h, w = x_nchw.shape
        ho, wo = h, w
        act = jnp.transpose(x_nchw, (1, 0, 2, 3)).reshape(c, n * h * w)
        act = _block_plain_call(act, p0, n, ho, wo)
    for p in layer_params[1:]:                         # remaining blocks: stride 1, no ds
        act = _block_plain_call(act, p, n, ho, wo)
    cout = act.shape[0]
    return jnp.transpose(act.reshape(cout, n, ho, wo), (1, 0, 2, 3))   # back to NCHW


# ------------------------------ parameters ------------------------------

def _conv_w_mat(w_oihw):
    """(O, I, kh, kw) -> (O, kh*kw*I), column order (kh, kw, i) to match the patch rows."""
    o, i, kh, kw = w_oihw.shape
    return jnp.transpose(w_oihw, (0, 2, 3, 1)).reshape(o, kh * kw * i)


def make_block_params(key, cin, cout, stride):
    has_ds = (stride != 1) or (cin != cout)            # expansion = 1 for BasicBlock
    ks = jax.random.split(key, 9)
    conv1_w = 0.1 * jax.random.normal(ks[0], (cout, cin, 3, 3), jnp.float32)
    bn1_g = 1.0 + 0.1 * jax.random.normal(ks[1], (cout,), jnp.float32)
    bn1_b = 0.1 * jax.random.normal(ks[2], (cout,), jnp.float32)
    conv2_w = 0.1 * jax.random.normal(ks[3], (cout, cout, 3, 3), jnp.float32)
    bn2_g = 1.0 + 0.1 * jax.random.normal(ks[4], (cout,), jnp.float32)
    bn2_b = 0.1 * jax.random.normal(ks[5], (cout,), jnp.float32)
    p = dict(
        # raw tensors (kept for the pure-JAX reference)
        conv1_w=conv1_w, conv2_w=conv2_w,
        bn1_g=bn1_g, bn1_b=bn1_b, bn2_g=bn2_g, bn2_b=bn2_b,
        stride=stride, has_downsample=has_ds, cin=cin,
        # kernel-ready tensors, reshaped ONCE here (hoisted out of the forward path)
        w1m=_conv_w_mat(conv1_w), w2m=_conv_w_mat(conv2_w),
        g1c=bn1_g.reshape(cout, 1), b1c=bn1_b.reshape(cout, 1),
        g2c=bn2_g.reshape(cout, 1), b2c=bn2_b.reshape(cout, 1),
    )
    if has_ds:
        ds_w = 0.1 * jax.random.normal(ks[6], (cout, cin, 1, 1), jnp.float32)
        ds_g = 1.0 + 0.1 * jax.random.normal(ks[7], (cout,), jnp.float32)
        ds_b = 0.1 * jax.random.normal(ks[8], (cout,), jnp.float32)
        p.update(ds_w=ds_w, ds_g=ds_g, ds_b=ds_b,
                 wdm=ds_w.reshape(cout, cin),
                 gdc=ds_g.reshape(cout, 1), bdc=ds_b.reshape(cout, 1))
    return p


def make_layer_params(key, in_channels, out_channels, blocks, stride):
    keys = jax.random.split(key, blocks)
    params = [make_block_params(keys[0], in_channels, out_channels, stride)]
    for i in range(1, blocks):
        params.append(make_block_params(keys[i], out_channels, out_channels, 1))
    return params


# ------------------------------ pure-JAX reference ------------------------------

def _ref_conv(x, w, s, pad):
    return jax.lax.conv_general_dilated(
        x, w, (s, s), [(pad, pad), (pad, pad)],
        dimension_numbers=("NCHW", "OIHW", "NCHW"))


def _ref_bn(x, g, b):
    mean = jnp.mean(x, axis=(0, 2, 3), keepdims=True)
    var = jnp.var(x, axis=(0, 2, 3), keepdims=True)
    return (x - mean) * jax.lax.rsqrt(var + _BN_EPS) * g.reshape(1, -1, 1, 1) \
        + b.reshape(1, -1, 1, 1)


def ref_layer(x, layer_params):
    for p in layer_params:
        out = _ref_conv(x, p["conv1_w"], p["stride"], 1)
        out = jax.nn.relu(_ref_bn(out, p["bn1_g"], p["bn1_b"]))
        out = _ref_conv(out, p["conv2_w"], 1, 1)
        out = _ref_bn(out, p["bn2_g"], p["bn2_b"])
        if p["has_downsample"]:
            idn = _ref_bn(_ref_conv(x, p["ds_w"], p["stride"], 0), p["ds_g"], p["ds_b"])
        else:
            idn = x
        x = jax.nn.relu(out + idn)
    return x


# TODO(synk): PyTorch training-mode BN also mutates running_mean/running_var buffers; that
# side effect has no impact on the forward output and is not modeled here.

if __name__ == "__main__":
    key = jax.random.PRNGKey(0)
    k_x, k_p = jax.random.split(key)

    in_channels, out_channels, blocks, stride = 4, 8, 2, 2
    x = jax.random.normal(k_x, (2, in_channels, 16, 16), jnp.float32)   # NCHW like PyTorch
    layer_params = make_layer_params(k_p, in_channels, out_channels, blocks, stride)

    fwd = jax.jit(lambda xin: resnet_layer_forward(xin, layer_params))
    out = jax.block_until_ready(fwd(x))

    expected = jax.block_until_ready(ref_layer(x, layer_params))
    assert out.shape == (2, out_channels, 8, 8), out.shape
    np.testing.assert_allclose(np.asarray(out), np.asarray(expected), rtol=1e-3, atol=1e-3)

    print("KERNEL_OK")
</pallas_src>

<mosaic_0001>
module attributes {stable_mosaic.version = 11 : i64} {
  func.func @_block_down_kernel(%arg0: memref<36x128xf32, #tpu.memory_space<vmem>>, %arg1: memref<8x36xf32, #tpu.memory_space<vmem>>, %arg2: memref<8x1xf32, #tpu.memory_space<vmem>>, %arg3: memref<8x1xf32, #tpu.memory_space<vmem>>, %arg4: memref<8x72xf32, #tpu.memory_space<vmem>>, %arg5: memref<8x1xf32, #tpu.memory_space<vmem>>, %arg6: memref<8x1xf32, #tpu.memory_space<vmem>>, %arg7: memref<8x4xf32, #tpu.memory_space<vmem>>, %arg8: memref<8x1xf32, #tpu.memory_space<vmem>>, %arg9: memref<8x1xf32, #tpu.memory_space<vmem>>, %arg10: memref<9x128xf32, #tpu.memory_space<vmem>>, %arg11: memref<8x128xf32, #tpu.memory_space<vmem>>) attributes {dimension_semantics = [], scalar_prefetch = 0 : i64, scratch_operands = 0 : i64, tpu.core_type = #tpu.core_type<tc>} {
    %c0 = arith.constant 0 : index
    %c0_0 = arith.constant 0 : index
    %0 = vector.load %arg0[%c0, %c0_0] : memref<36x128xf32, #tpu.memory_space<vmem>>, vector<36x128xf32>
    %c0_1 = arith.constant 0 : index
    %c0_2 = arith.constant 0 : index
    %1 = vector.load %arg10[%c0_1, %c0_2] : memref<9x128xf32, #tpu.memory_space<vmem>>, vector<9x128xf32>
    %c0_3 = arith.constant 0 : index
    %c0_4 = arith.constant 0 : index
    %2 = vector.load %arg1[%c0_3, %c0_4] : memref<8x36xf32, #tpu.memory_space<vmem>>, vector<8x36xf32>
    %cst = arith.constant dense<0.000000e+00> : vector<8x128xf32>
    %3 = tpu.matmul %2, %0, %cst {dimension_numbers = #tpu.dot_dimension_numbers<[1], [0], [0], [1], [0, 0, 1, 1], [], []>} : vector<8x36xf32>, vector<36x128xf32>, vector<8x128xf32> -> vector<8x128xf32>
    %c0_5 = arith.constant 0 : index
    %c0_6 = arith.constant 0 : index
    %4 = vector.load %arg2[%c0_5, %c0_6] : memref<8x1xf32, #tpu.memory_space<vmem>>, vector<8x1xf32>
    %c0_7 = arith.constant 0 : index
    %c0_8 = arith.constant 0 : index
    %5 = vector.load %arg3[%c0_7, %c0_8] : memref<8x1xf32, #tpu.memory_space<vmem>>, vector<8x1xf32>
    %cst_9 = arith.constant dense<0.000000e+00> : vector<8xf32>
    %6 = vector.multi_reduction <add>, %3, %cst_9 [1] : vector<8x128xf32> to vector<8xf32>
    %7 = vector.shape_cast %6 : vector<8xf32> to vector<8x1xf32>
    %8 = arith.mulf %3, %3 : vector<8x128xf32>
    %cst_10 = arith.constant dense<0.000000e+00> : vector<8xf32>
    %9 = vector.multi_reduction <add>, %8, %cst_10 [1] : vector<8x128xf32> to vector<8xf32>
    %10 = vector.shape_cast %9 : vector<8xf32> to vector<8x1xf32>
    %cst_11 = arith.constant 7.812500e-03 : f32
    %11 = vector.broadcast %cst_11 : f32 to vector<8x1xf32>
    %12 = arith.mulf %7, %11 : vector<8x1xf32>
    %cst_12 = arith.constant 7.812500e-03 : f32
    %13 = vector.broadcast %cst_12 : f32 to vector<8x1xf32>
    %14 = arith.mulf %10, %13 : vector<8x1xf32>
    %15 = arith.mulf %12, %12 : vector<8x1xf32>
    %16 = arith.subf %14, %15 : vector<8x1xf32>
    %17 = vector.broadcast %12 : vector<8x1xf32> to vector<8x128xf32>
    %18 = arith.subf %3, %17 : vector<8x128xf32>
    %cst_13 = arith.constant 9.99999974E-6 : f32
    %19 = vector.broadcast %cst_13 : f32 to vector<8x1xf32>
    %20 = arith.addf %16, %19 : vector<8x1xf32>
    %21 = math.rsqrt %20 : vector<8x1xf32>
    %22 = arith.mulf %21, %4 : vector<8x1xf32>
    %23 = vector.broadcast %22 : vector<8x1xf32> to vector<8x128xf32>
    %24 = arith.mulf %18, %23 : vector<8x128xf32>
    %25 = vector.broadcast %5 : vector<8x1xf32> to vector<8x128xf32>
    %26 = arith.addf %24, %25 : vector<8x128xf32>
    %cst_14 = arith.constant 0.000000e+00 : f32
    %27 = vector.broadcast %cst_14 : f32 to vector<8x128xf32>
    %28 = arith.maximumf %26, %27 : vector<8x128xf32>
    %c0_15 = arith.constant 0 : index
    %c0_16 = arith.constant 0 : index
    %29 = vector.load %arg4[%c0_15, %c0_16] : memref<8x72xf32, #tpu.memory_space<vmem>>, vector<8x72xf32>
    %c9_i32 = arith.constant 9 : i32
    %30 = tpu.dynamic_rotate %28 by %c9_i32 dim 1 : vector<8x128xf32>, i32 -> vector<8x128xf32>
    %31 = vector.extract_strided_slice %1 {offsets = [0, 0], sizes = [1, 128], strides = [1, 1]} : vector<9x128xf32> to vector<1x128xf32>
    %32 = vector.broadcast %31 : vector<1x128xf32> to vector<8x128xf32>
    %33 = arith.mulf %30, %32 : vector<8x128xf32>
    %c8_i32 = arith.constant 8 : i32
    %34 = tpu.dynamic_rotate %28 by %c8_i32 dim 1 : vector<8x128xf32>, i32 -> vector<8x128xf32>
    %35 = vector.extract_strided_slice %1 {offsets = [1, 0], sizes = [1, 128], strides = [1, 1]} : vector<9x128xf32> to vector<1x128xf32>
    %36 = vector.broadcast %35 : vector<1x128xf32> to vector<8x128xf32>
    %37 = arith.mulf %34, %36 : vector<8x128xf32>
    %c7_i32 = arith.constant 7 : i32
    %38 = tpu.dynamic_rotate %28 by %c7_i32 dim 1 : vector<8x128xf32>, i32 -> vector<8x128xf32>
    %39 = vector.extract_strided_slice %1 {offsets = [2, 0], sizes = [1, 128], strides = [1, 1]} : vector<9x128xf32> to vector<1x128xf32>
    %40 = vector.broadcast %39 : vector<1x128xf32> to vector<8x128xf32>
    %41 = arith.mulf %38, %40 : vector<8x128xf32>
    %c1_i32 = arith.constant 1 : i32
    %42 = tpu.dynamic_rotate %28 by %c1_i32 dim 1 : vector<8x128xf32>, i32 -> vector<8x128xf32>
    %43 = vector.extract_strided_slice %1 {offsets = [3, 0], sizes = [1, 128], strides = [1, 1]} : vector<9x128xf32> to vector<1x128xf32>
    %44 = vector.broadcast %43 : vector<1x128xf32> to vector<8x128xf32>
    %45 = arith.mulf %42, %44 : vector<8x128xf32>
    %46 = vector.extract_strided_slice %1 {offsets = [4, 0], sizes = [1, 128], strides = [1, 1]} : vector<9x128xf32> to vector<1x128xf32>
    %47 = vector.broadcast %46 : vector<1x128xf32> to vector<8x128xf32>
    %48 = arith.mulf %28, %47 : vector<8x128xf32>
    %c127_i32 = arith.constant 127 : i32
    %49 = tpu.dynamic_rotate %28 by %c127_i32 dim 1 : vector<8x128xf32>, i32 -> vector<8x128xf32>
    %50 = vector.extract_strided_slice %1 {offsets = [5, 0], sizes = [1, 128], strides = [1, 1]} : vector<9x128xf32> to vector<1x128xf32>
    %51 = vector.broadcast %50 : vector<1x128xf32> to vector<8x128xf32>
    %52 = arith.mulf %49, %51 : vector<8x128xf32>
    %c121_i32 = arith.constant 121 : i32
    %53 = tpu.dynamic_rotate %28 by %c121_i32 dim 1 : vector<8x128xf32>, i32 -> vector<8x128xf32>
    %54 = vector.extract_strided_slice %1 {offsets = [6, 0], sizes = [1, 128], strides = [1, 1]} : vector<9x128xf32> to vector<1x128xf32>
    %55 = vector.broadcast %54 : vector<1x128xf32> to vector<8x128xf32>
    %56 = arith.mulf %53, %55 : vector<8x128xf32>
    %c120_i32 = arith.constant 120 : i32
    %57 = tpu.dynamic_rotate %28 by %c120_i32 dim 1 : vector<8x128xf32>, i32 -> vector<8x128xf32>
    %58 = vector.extract_strided_slice %1 {offsets = [7, 0], sizes = [1, 128], strides = [1, 1]} : vector<9x128xf32> to vector<1x128xf32>
    %59 = vector.broadcast %58 : vector<1x128xf32> to vector<8x128xf32>
    %60 = arith.mulf %57, %59 : vector<8x128xf32>
    %c119_i32 = arith.constant 119 : i32
    %61 = tpu.dynamic_rotate %28 by %c119_i32 dim 1 : vector<8x128xf32>, i32 -> vector<8x128xf32>
    %62 = vector.extract_strided_slice %1 {offsets = [8, 0], sizes = [1, 128], strides = [1, 1]} : vector<9x128xf32> to vector<1x128xf32>
    %63 = vector.broadcast %62 : vector<1x128xf32> to vector<8x128xf32>
    %64 = arith.mulf %61, %63 : vector<8x128xf32>
    %65 = tpu.concatenate %33, %37, %41, %45, %48, %52, %56, %60, %64 in 0 : vector<8x128xf32>, vector<8x128xf32>, vector<8x128xf32>, vector<8x128xf32>, vector<8x128xf32>, vector<8x128xf32>, vector<8x128xf32>, vector<8x128xf32>, vector<8x128xf32> -> vector<72x128xf32>
    %cst_17 = arith.constant dense<0.000000e+00> : vector<8x128xf32>
    %66 = tpu.matmul %29, %65, %cst_17 {dimension_numbers = #tpu.dot_dimension_numbers<[1], [0], [0], [1], [0, 0, 1, 1], [], []>} : vector<8x72xf32>, vector<72x128xf32>, vector<8x128xf32> -> vector<8x128xf32>
    %c0_18 = arith.constant 0 : index
    %c0_19 = arith.constant 0 : index
    %67 = vector.load %arg5[%c0_18, %c0_19] : memref<8x1xf32, #tpu.memory_space<vmem>>, vector<8x1xf32>
    %c0_20 = arith.constant 0 : index
    %c0_21 = arith.constant 0 : index
    %68 = vector.load %arg6[%c0_20, %c0_21] : memref<8x1xf32, #tpu.memory_space<vmem>>, vector<8x1xf32>
    %cst_22 = arith.constant dense<0.000000e+00> : vector<8xf32>
    %69 = vector.multi_reduction <add>, %66, %cst_22 [1] : vector<8x128xf32> to vector<8xf32>
    %70 = vector.shape_cast %69 : vector<8xf32> to vector<8x1xf32>
    %71 = arith.mulf %66, %66 : vector<8x128xf32>
    %cst_23 = arith.constant dense<0.000000e+00> : vector<8xf32>
    %72 = vector.multi_reduction <add>, %71, %cst_23 [1] : vector<8x128xf32> to vector<8xf32>
    %73 = vector.shape_cast %72 : vector<8xf32> to vector<8x1xf32>
    %cst_24 = arith.constant 7.812500e-03 : f32
    %74 = vector.broadcast %cst_24 : f32 to vector<8x1xf32>
    %75 = arith.mulf %70, %74 : vector<8x1xf32>
    %cst_25 = arith.constant 7.812500e-03 : f32
    %76 = vector.broadcast %cst_25 : f32 to vector<8x1xf32>
    %77 = arith.mulf %73, %76 : vector<8x1xf32>
    %78 = arith.mulf %75, %75 : vector<8x1xf32>
    %79 = arith.subf %77, %78 : vector<8x1xf32>
    %80 = vector.broadcast %75 : vector<8x1xf32> to vector<8x128xf32>
    %81 = arith.subf %66, %80 : vector<8x128xf32>
    %cst_26 = arith.constant 9.99999974E-6 : f32
    %82 = vector.broadcast %cst_26 : f32 to vector<8x1xf32>
    %83 = arith.addf %79, %82 : vector<8x1xf32>
    %84 = math.rsqrt %83 : vector<8x1xf32>
    %85 = arith.mulf %84, %67 : vector<8x1xf32>
    %86 = vector.broadcast %85 : vector<8x1xf32> to vector<8x128xf32>
    %87 = arith.mulf %81, %86 : vector<8x128xf32>
    %88 = vector.broadcast %68 : vector<8x1xf32> to vector<8x128xf32>
    %89 = arith.addf %87, %88 : vector<8x128xf32>
    %90 = vector.extract_strided_slice %0 {offsets = [16, 0], sizes = [4, 128], strides = [1, 1]} : vector<36x128xf32> to vector<4x128xf32>
    %c0_27 = arith.constant 0 : index
    %c0_28 = arith.constant 0 : index
    %91 = vector.load %arg7[%c0_27, %c0_28] : memref<8x4xf32, #tpu.memory_space<vmem>>, vector<8x4xf32>
    %cst_29 = arith.constant dense<0.000000e+00> : vector<8x128xf32>
    %92 = tpu.matmul %91, %90, %cst_29 {dimension_numbers = #tpu.dot_dimension_numbers<[1], [0], [0], [1], [0, 0, 1, 1], [], []>} : vector<8x4xf32>, vector<4x128xf32>, vector<8x128xf32> -> vector<8x128xf32>
    %c0_30 = arith.constant 0 : index
    %c0_31 = arith.constant 0 : index
    %93 = vector.load %arg8[%c0_30, %c0_31] : memref<8x1xf32, #tpu.memory_space<vmem>>, vector<8x1xf32>
    %c0_32 = arith.constant 0 : index
    %c0_33 = arith.constant 0 : index
    %94 = vector.load %arg9[%c0_32, %c0_33] : memref<8x1xf32, #tpu.memory_space<vmem>>, vector<8x1xf32>
    %cst_34 = arith.constant dense<0.000000e+00> : vector<8xf32>
    %95 = vector.multi_reduction <add>, %92, %cst_34 [1] : vector<8x128xf32> to vector<8xf32>
    %96 = vector.shape_cast %95 : vector<8xf32> to vector<8x1xf32>
    %97 = arith.mulf %92, %92 : vector<8x128xf32>
    %cst_35 = arith.constant dense<0.000000e+00> : vector<8xf32>
    %98 = vector.multi_reduction <add>, %97, %cst_35 [1] : vector<8x128xf32> to vector<8xf32>
    %99 = vector.shape_cast %98 : vector<8xf32> to vector<8x1xf32>
    %cst_36 = arith.constant 7.812500e-03 : f32
    %100 = vector.broadcast %cst_36 : f32 to vector<8x1xf32>
    %101 = arith.mulf %96, %100 : vector<8x1xf32>
    %cst_37 = arith.constant 7.812500e-03 : f32
    %102 = vector.broadcast %cst_37 : f32 to vector<8x1xf32>
    %103 = arith.mulf %99, %102 : vector<8x1xf32>
    %104 = arith.mulf %101, %101 : vector<8x1xf32>
    %105 = arith.subf %103, %104 : vector<8x1xf32>
    %106 = vector.broadcast %101 : vector<8x1xf32> to vector<8x128xf32>
    %107 = arith.subf %92, %106 : vector<8x128xf32>
    %cst_38 = arith.constant 9.99999974E-6 : f32
    %108 = vector.broadcast %cst_38 : f32 to vector<8x1xf32>
    %109 = arith.addf %105, %108 : vector<8x1xf32>
    %110 = math.rsqrt %109 : vector<8x1xf32>
    %111 = arith.mulf %110, %93 : vector<8x1xf32>
    %112 = vector.broadcast %111 : vector<8x1xf32> to vector<8x128xf32>
    %113 = arith.mulf %107, %112 : vector<8x128xf32>
    %114 = vector.broadcast %94 : vector<8x1xf32> to vector<8x128xf32>
    %115 = arith.addf %113, %114 : vector<8x128xf32>
    %116 = arith.addf %89, %115 : vector<8x128xf32>
    %cst_39 = arith.constant 0.000000e+00 : f32
    %117 = vector.broadcast %cst_39 : f32 to vector<8x128xf32>
    %118 = arith.maximumf %116, %117 : vector<8x128xf32>
    %c0_40 = arith.constant 0 : index
    %c0_41 = arith.constant 0 : index
    %119 = vector.load %arg11[%c0_40, %c0_41] : memref<8x128xf32, #tpu.memory_space<vmem>>, vector<8x128xf32>
    tpu.vector_store %arg11[%c0_40, %c0_41], %118 {strides = array<i32>} : memref<8x128xf32, #tpu.memory_space<vmem>>, vector<8x128xf32>,
    return
  }
}

module attributes {stable_mosaic.version = 11 : i64} {
  func.func @_block_plain_kernel(%arg0: memref<8x128xf32, #tpu.memory_space<vmem>>, %arg1: memref<8x72xf32, #tpu.memory_space<vmem>>, %arg2: memref<8x1xf32, #tpu.memory_space<vmem>>, %arg3: memref<8x1xf32, #tpu.memory_space<vmem>>, %arg4: memref<8x72xf32, #tpu.memory_space<vmem>>, %arg5: memref<8x1xf32, #tpu.memory_space<vmem>>, %arg6: memref<8x1xf32, #tpu.memory_space<vmem>>, %arg7: memref<9x128xf32, #tpu.memory_space<vmem>>, %arg8: memref<8x128xf32, #tpu.memory_space<vmem>>) attributes {dimension_semantics = [], scalar_prefetch = 0 : i64, scratch_operands = 0 : i64, tpu.core_type = #tpu.core_type<tc>} {
    %c0 = arith.constant 0 : index
    %c0_0 = arith.constant 0 : index
    %0 = vector.load %arg0[%c0, %c0_0] : memref<8x128xf32, #tpu.memory_space<vmem>>, vector<8x128xf32>
    %c0_1 = arith.constant 0 : index
    %c0_2 = arith.constant 0 : index
    %1 = vector.load %arg7[%c0_1, %c0_2] : memref<9x128xf32, #tpu.memory_space<vmem>>, vector<9x128xf32>
    %c0_3 = arith.constant 0 : index
    %c0_4 = arith.constant 0 : index
    %2 = vector.load %arg1[%c0_3, %c0_4] : memref<8x72xf32, #tpu.memory_space<vmem>>, vector<8x72xf32>
    %c9_i32 = arith.constant 9 : i32
    %3 = tpu.dynamic_rotate %0 by %c9_i32 dim 1 : vector<8x128xf32>, i32 -> vector<8x128xf32>
    %4 = vector.extract_strided_slice %1 {offsets = [0, 0], sizes = [1, 128], strides = [1, 1]} : vector<9x128xf32> to vector<1x128xf32>
    %5 = vector.broadcast %4 : vector<1x128xf32> to vector<8x128xf32>
    %6 = arith.mulf %3, %5 : vector<8x128xf32>
    %c8_i32 = arith.constant 8 : i32
    %7 = tpu.dynamic_rotate %0 by %c8_i32 dim 1 : vector<8x128xf32>, i32 -> vector<8x128xf32>
    %8 = vector.extract_strided_slice %1 {offsets = [1, 0], sizes = [1, 128], strides = [1, 1]} : vector<9x128xf32> to vector<1x128xf32>
    %9 = vector.broadcast %8 : vector<1x128xf32> to vector<8x128xf32>
    %10 = arith.mulf %7, %9 : vector<8x128xf32>
    %c7_i32 = arith.constant 7 : i32
    %11 = tpu.dynamic_rotate %0 by %c7_i32 dim 1 : vector<8x128xf32>, i32 -> vector<8x128xf32>
    %12 = vector.extract_strided_slice %1 {offsets = [2, 0], sizes = [1, 128], strides = [1, 1]} : vector<9x128xf32> to vector<1x128xf32>
    %13 = vector.broadcast %12 : vector<1x128xf32> to vector<8x128xf32>
    %14 = arith.mulf %11, %13 : vector<8x128xf32>
    %c1_i32 = arith.constant 1 : i32
    %15 = tpu.dynamic_rotate %0 by %c1_i32 dim 1 : vector<8x128xf32>, i32 -> vector<8x128xf32>
    %16 = vector.extract_strided_slice %1 {offsets = [3, 0], sizes = [1, 128], strides = [1, 1]} : vector<9x128xf32> to vector<1x128xf32>
    %17 = vector.broadcast %16 : vector<1x128xf32> to vector<8x128xf32>
    %18 = arith.mulf %15, %17 : vector<8x128xf32>
    %19 = vector.extract_strided_slice %1 {offsets = [4, 0], sizes = [1, 128], strides = [1, 1]} : vector<9x128xf32> to vector<1x128xf32>
    %20 = vector.broadcast %19 : vector<1x128xf32> to vector<8x128xf32>
    %21 = arith.mulf %0, %20 : vector<8x128xf32>
    %c127_i32 = arith.constant 127 : i32
    %22 = tpu.dynamic_rotate %0 by %c127_i32 dim 1 : vector<8x128xf32>, i32 -> vector<8x128xf32>
    %23 = vector.extract_strided_slice %1 {offsets = [5, 0], sizes = [1, 128], strides = [1, 1]} : vector<9x128xf32> to vector<1x128xf32>
    %24 = vector.broadcast %23 : vector<1x128xf32> to vector<8x128xf32>
    %25 = arith.mulf %22, %24 : vector<8x128xf32>
    %c121_i32 = arith.constant 121 : i32
    %26 = tpu.dynamic_rotate %0 by %c121_i32 dim 1 : vector<8x128xf32>, i32 -> vector<8x128xf32>
    %27 = vector.extract_strided_slice %1 {offsets = [6, 0], sizes = [1, 128], strides = [1, 1]} : vector<9x128xf32> to vector<1x128xf32>
    %28 = vector.broadcast %27 : vector<1x128xf32> to vector<8x128xf32>
    %29 = arith.mulf %26, %28 : vector<8x128xf32>
    %c120_i32 = arith.constant 120 : i32
    %30 = tpu.dynamic_rotate %0 by %c120_i32 dim 1 : vector<8x128xf32>, i32 -> vector<8x128xf32>
    %31 = vector.extract_strided_slice %1 {offsets = [7, 0], sizes = [1, 128], strides = [1, 1]} : vector<9x128xf32> to vector<1x128xf32>
    %32 = vector.broadcast %31 : vector<1x128xf32> to vector<8x128xf32>
    %33 = arith.mulf %30, %32 : vector<8x128xf32>
    %c119_i32 = arith.constant 119 : i32
    %34 = tpu.dynamic_rotate %0 by %c119_i32 dim 1 : vector<8x128xf32>, i32 -> vector<8x128xf32>
    %35 = vector.extract_strided_slice %1 {offsets = [8, 0], sizes = [1, 128], strides = [1, 1]} : vector<9x128xf32> to vector<1x128xf32>
    %36 = vector.broadcast %35 : vector<1x128xf32> to vector<8x128xf32>
    %37 = arith.mulf %34, %36 : vector<8x128xf32>
    %38 = tpu.concatenate %6, %10, %14, %18, %21, %25, %29, %33, %37 in 0 : vector<8x128xf32>, vector<8x128xf32>, vector<8x128xf32>, vector<8x128xf32>, vector<8x128xf32>, vector<8x128xf32>, vector<8x128xf32>, vector<8x128xf32>, vector<8x128xf32> -> vector<72x128xf32>
    %cst = arith.constant dense<0.000000e+00> : vector<8x128xf32>
    %39 = tpu.matmul %2, %38, %cst {dimension_numbers = #tpu.dot_dimension_numbers<[1], [0], [0], [1], [0, 0, 1, 1], [], []>} : vector<8x72xf32>, vector<72x128xf32>, vector<8x128xf32> -> vector<8x128xf32>
    %c0_5 = arith.constant 0 : index
    %c0_6 = arith.constant 0 : index
    %40 = vector.load %arg2[%c0_5, %c0_6] : memref<8x1xf32, #tpu.memory_space<vmem>>, vector<8x1xf32>
    %c0_7 = arith.constant 0 : index
    %c0_8 = arith.constant 0 : index
    %41 = vector.load %arg3[%c0_7, %c0_8] : memref<8x1xf32, #tpu.memory_space<vmem>>, vector<8x1xf32>
    %cst_9 = arith.constant dense<0.000000e+00> : vector<8xf32>
    %42 = vector.multi_reduction <add>, %39, %cst_9 [1] : vector<8x128xf32> to vector<8xf32>
    %43 = vector.shape_cast %42 : vector<8xf32> to vector<8x1xf32>
    %44 = arith.mulf %39, %39 : vector<8x128xf32>
    %cst_10 = arith.constant dense<0.000000e+00> : vector<8xf32>
    %45 = vector.multi_reduction <add>, %44, %cst_10 [1] : vector<8x128xf32> to vector<8xf32>
    %46 = vector.shape_cast %45 : vector<8xf32> to vector<8x1xf32>
    %cst_11 = arith.constant 7.812500e-03 : f32
    %47 = vector.broadcast %cst_11 : f32 to vector<8x1xf32>
    %48 = arith.mulf %43, %47 : vector<8x1xf32>
    %cst_12 = arith.constant 7.812500e-03 : f32
    %49 = vector.broadcast %cst_12 : f32 to vector<8x1xf32>
    %50 = arith.mulf %46, %49 : vector<8x1xf32>
    %51 = arith.mulf %48, %48 : vector<8x1xf32>
    %52 = arith.subf %50, %51 : vector<8x1xf32>
    %53 = vector.broadcast %48 : vector<8x1xf32> to vector<8x128xf32>
    %54 = arith.subf %39, %53 : vector<8x128xf32>
    %cst_13 = arith.constant 9.99999974E-6 : f32
    %55 = vector.broadcast %cst_13 : f32 to vector<8x1xf32>
    %56 = arith.addf %52, %55 : vector<8x1xf32>
    %57 = math.rsqrt %56 : vector<8x1xf32>
    %58 = arith.mulf %57, %40 : vector<8x1xf32>
    %59 = vector.broadcast %58 : vector<8x1xf32> to vector<8x128xf32>
    %60 = arith.mulf %54, %59 : vector<8x128xf32>
    %61 = vector.broadcast %41 : vector<8x1xf32> to vector<8x128xf32>
    %62 = arith.addf %60, %61 : vector<8x128xf32>
    %cst_14 = arith.constant 0.000000e+00 : f32
    %63 = vector.broadcast %cst_14 : f32 to vector<8x128xf32>
    %64 = arith.maximumf %62, %63 : vector<8x128xf32>
    %c0_15 = arith.constant 0 : index
    %c0_16 = arith.constant 0 : index
    %65 = vector.load %arg4[%c0_15, %c0_16] : memref<8x72xf32, #tpu.memory_space<vmem>>, vector<8x72xf32>
    %c9_i32_17 = arith.constant 9 : i32
    %66 = tpu.dynamic_rotate %64 by %c9_i32_17 dim 1 : vector<8x128xf32>, i32 -> vector<8x128xf32>
    %67 = vector.extract_strided_slice %1 {offsets = [0, 0], sizes = [1, 128], strides = [1, 1]} : vector<9x128xf32> to vector<1x128xf32>
    %68 = vector.broadcast %67 : vector<1x128xf32> to vector<8x128xf32>
    %69 = arith.mulf %66, %68 : vector<8x128xf32>
    %c8_i32_18 = arith.constant 8 : i32
    %70 = tpu.dynamic_rotate %64 by %c8_i32_18 dim 1 : vector<8x128xf32>, i32 -> vector<8x128xf32>
    %71 = vector.extract_strided_slice %1 {offsets = [1, 0], sizes = [1, 128], strides = [1, 1]} : vector<9x128xf32> to vector<1x128xf32>
    %72 = vector.broadcast %71 : vector<1x128xf32> to vector<8x128xf32>
    %73 = arith.mulf %70, %72 : vector<8x128xf32>
    %c7_i32_19 = arith.constant 7 : i32
    %74 = tpu.dynamic_rotate %64 by %c7_i32_19 dim 1 : vector<8x128xf32>, i32 -> vector<8x128xf32>
    %75 = vector.extract_strided_slice %1 {offsets = [2, 0], sizes = [1, 128], strides = [1, 1]} : vector<9x128xf32> to vector<1x128xf32>
    %76 = vector.broadcast %75 : vector<1x128xf32> to vector<8x128xf32>
    %77 = arith.mulf %74, %76 : vector<8x128xf32>
    %c1_i32_20 = arith.constant 1 : i32
    %78 = tpu.dynamic_rotate %64 by %c1_i32_20 dim 1 : vector<8x128xf32>, i32 -> vector<8x128xf32>
    %79 = vector.extract_strided_slice %1 {offsets = [3, 0], sizes = [1, 128], strides = [1, 1]} : vector<9x128xf32> to vector<1x128xf32>
    %80 = vector.broadcast %79 : vector<1x128xf32> to vector<8x128xf32>
    %81 = arith.mulf %78, %80 : vector<8x128xf32>
    %82 = vector.extract_strided_slice %1 {offsets = [4, 0], sizes = [1, 128], strides = [1, 1]} : vector<9x128xf32> to vector<1x128xf32>
    %83 = vector.broadcast %82 : vector<1x128xf32> to vector<8x128xf32>
    %84 = arith.mulf %64, %83 : vector<8x128xf32>
    %c127_i32_21 = arith.constant 127 : i32
    %85 = tpu.dynamic_rotate %64 by %c127_i32_21 dim 1 : vector<8x128xf32>, i32 -> vector<8x128xf32>
    %86 = vector.extract_strided_slice %1 {offsets = [5, 0], sizes = [1, 128], strides = [1, 1]} : vector<9x128xf32> to vector<1x128xf32>
    %87 = vector.broadcast %86 : vector<1x128xf32> to vector<8x128xf32>
    %88 = arith.mulf %85, %87 : vector<8x128xf32>
    %c121_i32_22 = arith.constant 121 : i32
    %89 = tpu.dynamic_rotate %64 by %c121_i32_22 dim 1 : vector<8x128xf32>, i32 -> vector<8x128xf32>
    %90 = vector.extract_strided_slice %1 {offsets = [6, 0], sizes = [1, 128], strides = [1, 1]} : vector<9x128xf32> to vector<1x128xf32>
    %91 = vector.broadcast %90 : vector<1x128xf32> to vector<8x128xf32>
    %92 = arith.mulf %89, %91 : vector<8x128xf32>
    %c120_i32_23 = arith.constant 120 : i32
    %93 = tpu.dynamic_rotate %64 by %c120_i32_23 dim 1 : vector<8x128xf32>, i32 -> vector<8x128xf32>
    %94 = vector.extract_strided_slice %1 {offsets = [7, 0], sizes = [1, 128], strides = [1, 1]} : vector<9x128xf32> to vector<1x128xf32>
    %95 = vector.broadcast %94 : vector<1x128xf32> to vector<8x128xf32>
    %96 = arith.mulf %93, %95 : vector<8x128xf32>
    %c119_i32_24 = arith.constant 119 : i32
    %97 = tpu.dynamic_rotate %64 by %c119_i32_24 dim 1 : vector<8x128xf32>, i32 -> vector<8x128xf32>
    %98 = vector.extract_strided_slice %1 {offsets = [8, 0], sizes = [1, 128], strides = [1, 1]} : vector<9x128xf32> to vector<1x128xf32>
    %99 = vector.broadcast %98 : vector<1x128xf32> to vector<8x128xf32>
    %100 = arith.mulf %97, %99 : vector<8x128xf32>
    %101 = tpu.concatenate %69, %73, %77, %81, %84, %88, %92, %96, %100 in 0 : vector<8x128xf32>, vector<8x128xf32>, vector<8x128xf32>, vector<8x128xf32>, vector<8x128xf32>, vector<8x128xf32>, vector<8x128xf32>, vector<8x128xf32>, vector<8x128xf32> -> vector<72x128xf32>
    %cst_25 = arith.constant dense<0.000000e+00> : vector<8x128xf32>
    %102 = tpu.matmul %65, %101, %cst_25 {dimension_numbers = #tpu.dot_dimension_numbers<[1], [0], [0], [1], [0, 0, 1, 1], [], []>} : vector<8x72xf32>, vector<72x128xf32>, vector<8x128xf32> -> vector<8x128xf32>
    %c0_26 = arith.constant 0 : index
    %c0_27 = arith.constant 0 : index
    %103 = vector.load %arg5[%c0_26, %c0_27] : memref<8x1xf32, #tpu.memory_space<vmem>>, vector<8x1xf32>
    %c0_28 = arith.constant 0 : index
    %c0_29 = arith.constant 0 : index
    %104 = vector.load %arg6[%c0_28, %c0_29] : memref<8x1xf32, #tpu.memory_space<vmem>>, vector<8x1xf32>
    %cst_30 = arith.constant dense<0.000000e+00> : vector<8xf32>
    %105 = vector.multi_reduction <add>, %102, %cst_30 [1] : vector<8x128xf32> to vector<8xf32>
    %106 = vector.shape_cast %105 : vector<8xf32> to vector<8x1xf32>
    %107 = arith.mulf %102, %102 : vector<8x128xf32>
    %cst_31 = arith.constant dense<0.000000e+00> : vector<8xf32>
    %108 = vector.multi_reduction <add>, %107, %cst_31 [1] : vector<8x128xf32> to vector<8xf32>
    %109 = vector.shape_cast %108 : vector<8xf32> to vector<8x1xf32>
    %cst_32 = arith.constant 7.812500e-03 : f32
    %110 = vector.broadcast %cst_32 : f32 to vector<8x1xf32>
    %111 = arith.mulf %106, %110 : vector<8x1xf32>
    %cst_33 = arith.constant 7.812500e-03 : f32
    %112 = vector.broadcast %cst_33 : f32 to vector<8x1xf32>
    %113 = arith.mulf %109, %112 : vector<8x1xf32>
    %114 = arith.mulf %111, %111 : vector<8x1xf32>
    %115 = arith.subf %113, %114 : vector<8x1xf32>
    %116 = vector.broadcast %111 : vector<8x1xf32> to vector<8x128xf32>
    %117 = arith.subf %102, %116 : vector<8x128xf32>
    %cst_34 = arith.constant 9.99999974E-6 : f32
    %118 = vector.broadcast %cst_34 : f32 to vector<8x1xf32>
    %119 = arith.addf %115, %118 : vector<8x1xf32>
    %120 = math.rsqrt %119 : vector<8x1xf32>
    %121 = arith.mulf %120, %103 : vector<8x1xf32>
    %122 = vector.broadcast %121 : vector<8x1xf32> to vector<8x128xf32>
    %123 = arith.mulf %117, %122 : vector<8x128xf32>
    %124 = vector.broadcast %104 : vector<8x1xf32> to vector<8x128xf32>
    %125 = arith.addf %123, %124 : vector<8x128xf32>
    %126 = arith.addf %125, %0 : vector<8x128xf32>
    %cst_35 = arith.constant 0.000000e+00 : f32
    %127 = vector.broadcast %cst_35 : f32 to vector<8x128xf32>
    %128 = arith.maximumf %126, %127 : vector<8x128xf32>
    %c0_36 = arith.constant 0 : index
    %c0_37 = arith.constant 0 : index
    %129 = vector.load %arg8[%c0_36, %c0_37] : memref<8x128xf32, #tpu.memory_space<vmem>>, vector<8x128xf32>
    tpu.vector_store %arg8[%c0_36, %c0_37], %128 {strides = array<i32>} : memref<8x128xf32, #tpu.memory_space<vmem>>, vector<8x128xf32>,
    return
  }
}

</mosaic_0001>

<llo_original>
// kernel: _lambda_.2
$region0: #{_lambda_.2}
  #allocation0 [shape = 'u32[]', space=smem, size = 0x4, offset = 0x4, fixed_abs, tag = 'smem constant byte address 0x4 - core index']
  #allocation1 [shape = 'u32[72,128]{1,0:T(1,128)}', space=vmem, size = 0x9000, scoped, tag = 'internal scratch']
  %s0 = inlined_call_operand.vmem [shape: f32[36,128], index: 0, kind: input, shape index: {}]
  %s1 = inlined_call_operand.vmem [shape: f32[8,36], index: 1, kind: input, shape index: {}]
  %s2 = inlined_call_operand.vmem [shape: f32[8,1], index: 2, kind: input, shape index: {}]
  %s3 = inlined_call_operand.vmem [shape: f32[8,1], index: 3, kind: input, shape index: {}]
  %s4 = inlined_call_operand.vmem [shape: f32[8,72], index: 4, kind: input, shape index: {}]
  %s5 = inlined_call_operand.vmem [shape: f32[8,1], index: 5, kind: input, shape index: {}]
  %s6 = inlined_call_operand.vmem [shape: f32[8,1], index: 6, kind: input, shape index: {}]
  %s7 = inlined_call_operand.vmem [shape: f32[8,4], index: 7, kind: input, shape index: {}]
  %s8 = inlined_call_operand.vmem [shape: f32[8,1], index: 8, kind: input, shape index: {}]
  %s9 = inlined_call_operand.vmem [shape: f32[8,1], index: 9, kind: input, shape index: {}]
  %s10 = inlined_call_operand.vmem [shape: f32[9,128], index: 10, kind: input, shape index: {}]
  %s11 = inlined_call_operand.vmem [shape: f32[8,128], index: 11, kind: output, shape index: {}]
  %s12 = sld [smem:[#allocation0]]
  $region54: #{_lambda_.2} parent=0
    _
  %s14 = ssub.s32 1, %s12
  %s15 = scalar_select 0, %s14, %s12
  // Predicated region
  $region2: #{_lambda_.2} parent=0 // pred_check
    _
  $region3: #{_lambda_.2} parent=0 // pred_check_branch
    %17 = sbr.rel (0) target = $region5
  $region4: #{_lambda_.2} parent=0 // pred_region
    _
  $region5: #{_lambda_.2} parent=0 // pred_fallthru
    _
  // Predicated region
  $region6: #{_lambda_.2} parent=0 // pred_check
    _
  $region7: #{_lambda_.2} parent=0 // pred_check_branch
    %19 = sbr.rel (0) target = $region9
  $region8: #{_lambda_.2} parent=0 // pred_region
    _
  $region9: #{_lambda_.2} parent=0 // pred_fallthru
    _
  // Predicated region
  $region10: #{_lambda_.2} parent=0 // pred_check
    _
  $region11: #{_lambda_.2} parent=0 // pred_check_branch
    %21 = sbr.rel (0) target = $region13
  $region12: #{_lambda_.2} parent=0 // pred_region
    _
  $region13: #{_lambda_.2} parent=0 // pred_fallthru
    _
  // Predicated region
  $region14: #{_lambda_.2} parent=0 // pred_check
    _
  $region15: #{_lambda_.2} parent=0 // pred_check_branch
    %23 = sbr.rel (0) target = $region17
  $region16: #{_lambda_.2} parent=0 // pred_region
    _
  $region17: #{_lambda_.2} parent=0 // pred_fallthru
    _
  // Predicated region
  $region18: #{_lambda_.2} parent=0 // pred_check
    _
  $region19: #{_lambda_.2} parent=0 // pred_check_branch
    %25 = sbr.rel (0) target = $region21
  $region20: #{_lambda_.2} parent=0 // pred_region
    _
  $region21: #{_lambda_.2} parent=0 // pred_fallthru
    _
  // Predicated region
  $region22: #{_lambda_.2} parent=0 // pred_check
    _
  $region23: #{_lambda_.2} parent=0 // pred_check_branch
    %27 = sbr.rel (0) target = $region25
  $region24: #{_lambda_.2} parent=0 // pred_region
    _
  $region25: #{_lambda_.2} parent=0 // pred_fallthru
    _
  // Predicated region
  $region26: #{_lambda_.2} parent=0 // pred_check
    _
  $region27: #{_lambda_.2} parent=0 // pred_check_branch
    %29 = sbr.rel (0) target = $region29
  $region28: #{_lambda_.2} parent=0 // pred_region
    _
  $region29: #{_lambda_.2} parent=0 // pred_fallthru
    _
  // Predicated region
  $region30: #{_lambda_.2} parent=0 // pred_check
    _
  $region31: #{_lambda_.2} parent=0 // pred_check_branch
    %31 = sbr.rel (0) target = $region33
  $region32: #{_lambda_.2} parent=0 // pred_region
    _
  $region33: #{_lambda_.2} parent=0 // pred_fallthru
    _
  // Predicated region
  $region34: #{_lambda_.2} parent=0 // pred_check
    _
  $region35: #{_lambda_.2} parent=0 // pred_check_branch
    %33 = sbr.rel (0) target = $region37
  $region36: #{_lambda_.2} parent=0 // pred_region
    _
  $region37: #{_lambda_.2} parent=0 // pred_fallthru
    _
  // Predicated region
  $region38: #{_lambda_.2} parent=0 // pred_check
    _
  $region39: #{_lambda_.2} parent=0 // pred_check_branch
    %35 = sbr.rel (0) target = $region41
  $region40: #{_lambda_.2} parent=0 // pred_region
    _
  $region41: #{_lambda_.2} parent=0 // pred_fallthru
    _
  // Predicated region
  $region42: #{_lambda_.2} parent=0 // pred_check
    _
  $region43: #{_lambda_.2} parent=0 // pred_check_branch
    %37 = sbr.rel (0) target = $region45
  $region44: #{_lambda_.2} parent=0 // pred_region
    _
  $region45: #{_lambda_.2} parent=0 // pred_fallthru
    _
  %v38 = vld [vmem:[%s0] sm:$0xff]
  %v39 = vld [vmem:[%s0 + $0x8] sm:$0xff]
  %v40 = vld [vmem:[%s0 + $0x10] sm:$0xff]
  %v41 = vld [vmem:[%s0 + $0x18] sm:$0xff]
  %v42 = vld [vmem:[%s0 + $0x20] sm:$0xf]
  %v43 = vld [vmem:[%s10] sm:$0xff]
  %v44 = vld [vmem:[%s10 + $0x8] sm:$0x1]
  %v45 = vld [vmem:[%s1] sm:$0xff]
  %vm46 = vcmask 293888
  %v48 = vsel %vm46, %v45, 0
  %vm50 = vcmask 1043456
  %v52 = vsel %vm50, %v42, 0
  %54 = vmatpush.msra.mxu0 0.0
  %55 = vmatpush.msra.mxu0 0.0
  %56 = vmatpush.msra.mxu0 0.0
  %57 = vmatpush.msra.mxu0 0.0
  %58 = vmatpush.msra.mxu0 0.0
  %59 = vmatpush.msra.mxu0 0.0
  %60 = vmatpush.msra.mxu0 0.0
  %61 = vmatpush.msra.mxu0 0.0
  %62 = vmatpush.msra.mxu0 0.0
  %63 = vmatpush.msra.mxu0 0.0
  %64 = vmatpush.msra.mxu0 0.0
  %65 = vmatpush.msra.mxu0 %v52
  %66 = vmatpush.msra.mxu0 %v41
  %67 = vmatpush.msra.mxu0 %v40
  %68 = vmatpush.msra.mxu0 %v39
  %69 = vmatpush.msra.mxu0 %v38
  %70 = vmatmul.f32.gmra.mxu0 %v48
  %v71 = vpop.f32.mrf.mxu0
  %v72 = vadd.f32 0.0, %v71
  %73 = vdwg.mxu0
  %v74 = vld [vmem:[%s2] sm:$0xff]
  %v75 = vld [vmem:[%s3] sm:$0xff]
  %76 = vadd.xlane.f32.xlu0 %v72
  %v77 = vpop.xlane.xlu0 %76
  %v78 = vmul.f32 %v72, %v72
  %79 = vadd.xlane.f32.xlu0 %v78
  %v80 = vpop.xlane.xlu0 %79
  %v81 = vmul.f32 %v77, 0.0078125
  %v82 = vmul.f32 %v80, 0.0078125
  %v83 = vmul.f32 %v81, %v81
  %v84 = vsub.f32 %v82, %v83
  %v85 = vsub.f32 %v72, %v81
  %v86 = vadd.f32 %v84, 1e-05
  %v87 = vrsqrt.pop %v86
  %v88 = vmul.f32 %v87, %v86
  %v89 = vmul.f32 %v88, %v87
  %v90 = vmul.f32 0.5, %v89
  %v91 = vsub.f32 1.5, %v90
  %v92 = vmul.f32 %v87, %v91
  %vm93 = vweird.f32 %v86
  %vm94 = vweird.f32 %v87
  %vm95 = vmor %vm93, %vm94
  %v96 = vsel %vm95, %v87, %v92
  %v97 = vmul.f32 %v96, %v74
  %99 = vset.pattern.permute.xlu0 0
  %100 = vperm.xlu0 %99, %v97
  %v101 = vpop.permute.xlu0 %100
  %v103 = vmul.f32 %v85, %v101
  %105 = vset.pattern.permute.xlu0 0
  %106 = vperm.xlu0 %105, %v75
  %v107 = vpop.permute.xlu0 %106
  %v109 = vadd.f32 %v103, %v107
  %v110 = vmax.f32 %v109, 0.0
  %v111 = vld [vmem:[%s4] sm:$0xff]
  %112 = vrot.lane.b32.xlu0 %v110, 9
  %v113 = vpop.permute.xlu0 %112
  %v114 = vperm.slane %v43, 0
  %v115 = vmul.f32 %v113, %v114
  %116 = vrot.lane.b32.xlu0 %v110, 8
  %v117 = vpop.permute.xlu0 %116
  %v118 = vperm.slane %v43, 1
  %v119 = vmul.f32 %v117, %v118
  %120 = vrot.lane.b32.xlu0 %v110, 7
  %v121 = vpop.permute.xlu0 %120
  %v122 = vperm.slane %v43, 2
  %v123 = vmul.f32 %v121, %v122
  %124 = vrot.lane.b32.xlu0 %v110, 1
  %v125 = vpop.permute.xlu0 %124
  %v126 = vperm.slane %v43, 3
  %v127 = vmul.f32 %v125, %v126
  %v128 = vperm.slane %v43, 4
  %v129 = vmul.f32 %v110, %v128
  %130 = vrot.lane.b32.xlu0 %v110, 127
  %v131 = vpop.permute.xlu0 %130
  %v132 = vperm.slane %v43, 5
  %v133 = vmul.f32 %v131, %v132
  %134 = vrot.lane.b32.xlu0 %v110, 121
  %v135 = vpop.permute.xlu0 %134
  %v136 = vperm.slane %v43, 6
  %v137 = vmul.f32 %v135, %v136
  %138 = vrot.lane.b32.xlu0 %v110, 120
  %v139 = vpop.permute.xlu0 %138
  %v140 = vperm.slane %v43, 7
  %v141 = vmul.f32 %v139, %v140
  %142 = vrot.lane.b32.xlu0 %v110, 119
  %v143 = vpop.permute.xlu0 %142
  %v144 = vperm.slane %v44, 0
  %v145 = vmul.f32 %v143, %v144
  %vm146 = vcmask 588800
  %v148 = vsel %vm146, %v111, 0
  %150 = vmatpush.msra.mxu0 0.0
  %151 = vmatpush.msra.mxu0 0.0
  %152 = vmatpush.msra.mxu0 0.0
  %153 = vmatpush.msra.mxu0 0.0
  %154 = vmatpush.msra.mxu0 0.0
  %155 = vmatpush.msra.mxu0 0.0
  %156 = vmatpush.msra.mxu0 0.0
  %157 = vmatpush.msra.mxu0 %v145
  %158 = vmatpush.msra.mxu0 %v141
  %159 = vmatpush.msra.mxu0 %v137
  %160 = vmatpush.msra.mxu0 %v133
  %161 = vmatpush.msra.mxu0 %v129
  %162 = vmatpush.msra.mxu0 %v127
  %163 = vmatpush.msra.mxu0 %v123
  %164 = vmatpush.msra.mxu0 %v119
  %165 = vmatpush.msra.mxu0 %v115
  %166 = vmatmul.f32.gmra.mxu0 %v148
  %v167 = vpop.f32.mrf.mxu0
  %v168 = vadd.f32 0.0, %v167
  %169 = vdwg.mxu0
  %v170 = vld [vmem:[%s5] sm:$0xff]
  %v171 = vld [vmem:[%s6] sm:$0xff]
  %172 = vadd.xlane.f32.xlu0 %v168
  %v173 = vpop.xlane.xlu0 %172
  %v174 = vmul.f32 %v168, %v168
  %175 = vadd.xlane.f32.xlu0 %v174
  %v176 = vpop.xlane.xlu0 %175
  %v177 = vmul.f32 %v173, 0.0078125
  %v178 = vmul.f32 %v176, 0.0078125
  %v179 = vmul.f32 %v177, %v177
  %v180 = vsub.f32 %v178, %v179
  %v181 = vsub.f32 %v168, %v177
  %v182 = vadd.f32 %v180, 1e-05
  %v183 = vrsqrt.pop %v182
  %v184 = vmul.f32 %v183, %v182
  %v185 = vmul.f32 %v184, %v183
  %v186 = vmul.f32 0.5, %v185
  %v187 = vsub.f32 1.5, %v186
  %v188 = vmul.f32 %v183, %v187
  %vm189 = vweird.f32 %v182
  %vm190 = vweird.f32 %v183
  %vm191 = vmor %vm189, %vm190
  %v192 = vsel %vm191, %v183, %v188
  %v193 = vmul.f32 %v192, %v170
  %195 = vset.pattern.permute.xlu0 0
  %196 = vperm.xlu0 %195, %v193
  %v197 = vpop.permute.xlu0 %196
  %v199 = vmul.f32 %v181, %v197
  %201 = vset.pattern.permute.xlu0 0
  %202 = vperm.xlu0 %201, %v171
  %v203 = vpop.permute.xlu0 %202
  %v205 = vadd.f32 %v199, %v203
  %v206 = vld [vmem:[%s7] sm:$0xff]
  %vm207 = vcmask 31744
  %v209 = vsel %vm207, %v206, 0
  %v212 = vsel %vm50, %v40, 0
  %214 = vmatpush.msra.mxu0 0.0
  %215 = vmatpush.msra.mxu0 0.0
  %216 = vmatpush.msra.mxu0 0.0
  %217 = vmatpush.msra.mxu0 0.0
  %218 = vmatpush.msra.mxu0 0.0
  %219 = vmatpush.msra.mxu0 0.0
  %220 = vmatpush.msra.mxu0 0.0
  %221 = vmatpush.msra.mxu0 0.0
  %222 = vmatpush.msra.mxu0 0.0
  %223 = vmatpush.msra.mxu0 0.0
  %224 = vmatpush.msra.mxu0 0.0
  %225 = vmatpush.msra.mxu0 0.0
  %226 = vmatpush.msra.mxu0 0.0
  %227 = vmatpush.msra.mxu0 0.0
  %228 = vmatpush.msra.mxu0 0.0
  %229 = vmatpush.msra.mxu0 %v212
  %230 = vmatmul.f32.gmra.mxu0 %v209
  %v231 = vpop.f32.mrf.mxu0
  %v232 = vadd.f32 0.0, %v231
  %233 = vdwg.mxu0
  %v234 = vld [vmem:[%s8] sm:$0xff]
  %v235 = vld [vmem:[%s9] sm:$0xff]
  %236 = vadd.xlane.f32.xlu0 %v232
  %v237 = vpop.xlane.xlu0 %236
  %v238 = vmul.f32 %v232, %v232
  %239 = vadd.xlane.f32.xlu0 %v238
  %v240 = vpop.xlane.xlu0 %239
  %v241 = vmul.f32 %v237, 0.0078125
  %v242 = vmul.f32 %v240, 0.0078125
  %v243 = vmul.f32 %v241, %v241
  %v244 = vsub.f32 %v242, %v243
  %v245 = vsub.f32 %v232, %v241
  %v246 = vadd.f32 %v244, 1e-05
  %v247 = vrsqrt.pop %v246
  %v248 = vmul.f32 %v247, %v246
  %v249 = vmul.f32 %v248, %v247
  %v250 = vmul.f32 0.5, %v249
  %v251 = vsub.f32 1.5, %v250
  %v252 = vmul.f32 %v247, %v251
  %vm253 = vweird.f32 %v246
  %vm254 = vweird.f32 %v247
  %vm255 = vmor %vm253, %vm254
  %v256 = vsel %vm255, %v247, %v252
  %v257 = vmul.f32 %v256, %v234
  %259 = vset.pattern.permute.xlu0 0
  %260 = vperm.xlu0 %259, %v257
  %v261 = vpop.permute.xlu0 %260
  %v263 = vmul.f32 %v245, %v261
  %265 = vset.pattern.permute.xlu0 0
  %266 = vperm.xlu0 %265, %v235
  %v267 = vpop.permute.xlu0 %266
  %v269 = vadd.f32 %v263, %v267
  %v270 = vadd.f32 %v205, %v269
  %v271 = vmax.f32 %v270, 0.0
  %272 = vst [vmem:[%s11] sm:$0xff] %v271
  // Predicated region
  $region46: #{_lambda_.2} parent=0 // pred_check
    _
  $region47: #{_lambda_.2} parent=0 // pred_check_branch
    %274 = sbr.rel (0) target = $region49
  $region48: #{_lambda_.2} parent=0 // pred_region
    _
  $region49: #{_lambda_.2} parent=0 // pred_fallthru
    _
  // Predicated region
  $region50: #{_lambda_.2} parent=0 // pred_check
    _
  $region51: #{_lambda_.2} parent=0 // pred_check_branch
    %276 = sbr.rel (0) target = $region53
  $region52: #{_lambda_.2} parent=0 // pred_region
    _
  $region53: #{_lambda_.2} parent=0 // pred_fallthru
    _

// kernel: _lambda_.3
$region0: #{_lambda_.3}
  #allocation0 [shape = 'u32[]', space=smem, size = 0x4, offset = 0x4, fixed_abs, tag = 'smem constant byte address 0x4 - core index']
  #allocation1 [shape = 'u32[72,128]{1,0:T(1,128)}', space=vmem, size = 0x9000, scoped, tag = 'internal scratch']
  %s0 = inlined_call_operand.vmem [shape: f32[8,128], index: 0, kind: input, shape index: {}]
  %s1 = inlined_call_operand.vmem [shape: f32[8,72], index: 1, kind: input, shape index: {}]
  %s2 = inlined_call_operand.vmem [shape: f32[8,1], index: 2, kind: input, shape index: {}]
  %s3 = inlined_call_operand.vmem [shape: f32[8,1], index: 3, kind: input, shape index: {}]
  %s4 = inlined_call_operand.vmem [shape: f32[8,72], index: 4, kind: input, shape index: {}]
  %s5 = inlined_call_operand.vmem [shape: f32[8,1], index: 5, kind: input, shape index: {}]
  %s6 = inlined_call_operand.vmem [shape: f32[8,1], index: 6, kind: input, shape index: {}]
  %s7 = inlined_call_operand.vmem [shape: f32[9,128], index: 7, kind: input, shape index: {}]
  %s8 = inlined_call_operand.vmem [shape: f32[8,128], index: 8, kind: output, shape index: {}]
  %s9 = sld [smem:[#allocation0]]
  $region42: #{_lambda_.3} parent=0
    _
  %s11 = ssub.s32 1, %s9
  %s12 = scalar_select 0, %s11, %s9
  // Predicated region
  $region2: #{_lambda_.3} parent=0 // pred_check
    _
  $region3: #{_lambda_.3} parent=0 // pred_check_branch
    %14 = sbr.rel (0) target = $region5
  $region4: #{_lambda_.3} parent=0 // pred_region
    _
  $region5: #{_lambda_.3} parent=0 // pred_fallthru
    _
  // Predicated region
  $region6: #{_lambda_.3} parent=0 // pred_check
    _
  $region7: #{_lambda_.3} parent=0 // pred_check_branch
    %16 = sbr.rel (0) target = $region9
  $region8: #{_lambda_.3} parent=0 // pred_region
    _
  $region9: #{_lambda_.3} parent=0 // pred_fallthru
    _
  // Predicated region
  $region10: #{_lambda_.3} parent=0 // pred_check
    _
  $region11: #{_lambda_.3} parent=0 // pred_check_branch
    %18 = sbr.rel (0) target = $region13
  $region12: #{_lambda_.3} parent=0 // pred_region
    _
  $region13: #{_lambda_.3} parent=0 // pred_fallthru
    _
  // Predicated region
  $region14: #{_lambda_.3} parent=0 // pred_check
    _
  $region15: #{_lambda_.3} parent=0 // pred_check_branch
    %20 = sbr.rel (0) target = $region17
  $region16: #{_lambda_.3} parent=0 // pred_region
    _
  $region17: #{_lambda_.3} parent=0 // pred_fallthru
    _
  // Predicated region
  $region18: #{_lambda_.3} parent=0 // pred_check
    _
  $region19: #{_lambda_.3} parent=0 // pred_check_branch
    %22 = sbr.rel (0) target = $region21
  $region20: #{_lambda_.3} parent=0 // pred_region
    _
  $region21: #{_lambda_.3} parent=0 // pred_fallthru
    _
  // Predicated region
  $region22: #{_lambda_.3} parent=0 // pred_check
    _
  $region23: #{_lambda_.3} parent=0 // pred_check_branch
    %24 = sbr.rel (0) target = $region25
  $region24: #{_lambda_.3} parent=0 // pred_region
    _
  $region25: #{_lambda_.3} parent=0 // pred_fallthru
    _
  // Predicated region
  $region26: #{_lambda_.3} parent=0 // pred_check
    _
  $region27: #{_lambda_.3} parent=0 // pred_check_branch
    %26 = sbr.rel (0) target = $region29
  $region28: #{_lambda_.3} parent=0 // pred_region
    _
  $region29: #{_lambda_.3} parent=0 // pred_fallthru
    _
  // Predicated region
  $region30: #{_lambda_.3} parent=0 // pred_check
    _
  $region31: #{_lambda_.3} parent=0 // pred_check_branch
    %28 = sbr.rel (0) target = $region33
  $region32: #{_lambda_.3} parent=0 // pred_region
    _
  $region33: #{_lambda_.3} parent=0 // pred_fallthru
    _
  %v29 = vld [vmem:[%s0] sm:$0xff]
  %v30 = vld [vmem:[%s7] sm:$0xff]
  %v31 = vld [vmem:[%s7 + $0x8] sm:$0x1]
  %v32 = vld [vmem:[%s1] sm:$0xff]
  %33 = vrot.lane.b32.xlu0 %v29, 9
  %v34 = vpop.permute.xlu0 %33
  %v35 = vperm.slane %v30, 0
  %v36 = vmul.f32 %v34, %v35
  %37 = vrot.lane.b32.xlu0 %v29, 8
  %v38 = vpop.permute.xlu0 %37
  %v39 = vperm.slane %v30, 1
  %v40 = vmul.f32 %v38, %v39
  %41 = vrot.lane.b32.xlu0 %v29, 7
  %v42 = vpop.permute.xlu0 %41
  %v43 = vperm.slane %v30, 2
  %v44 = vmul.f32 %v42, %v43
  %45 = vrot.lane.b32.xlu0 %v29, 1
  %v46 = vpop.permute.xlu0 %45
  %v47 = vperm.slane %v30, 3
  %v48 = vmul.f32 %v46, %v47
  %v49 = vperm.slane %v30, 4
  %v50 = vmul.f32 %v29, %v49
  %51 = vrot.lane.b32.xlu0 %v29, 127
  %v52 = vpop.permute.xlu0 %51
  %v53 = vperm.slane %v30, 5
  %v54 = vmul.f32 %v52, %v53
  %55 = vrot.lane.b32.xlu0 %v29, 121
  %v56 = vpop.permute.xlu0 %55
  %v57 = vperm.slane %v30, 6
  %v58 = vmul.f32 %v56, %v57
  %59 = vrot.lane.b32.xlu0 %v29, 120
  %v60 = vpop.permute.xlu0 %59
  %v61 = vperm.slane %v30, 7
  %v62 = vmul.f32 %v60, %v61
  %63 = vrot.lane.b32.xlu0 %v29, 119
  %v64 = vpop.permute.xlu0 %63
  %v65 = vperm.slane %v31, 0
  %v66 = vmul.f32 %v64, %v65
  %vm67 = vcmask 588800
  %v69 = vsel %vm67, %v32, 0
  %71 = vmatpush.msra.mxu0 0.0
  %72 = vmatpush.msra.mxu0 0.0
  %73 = vmatpush.msra.mxu0 0.0
  %74 = vmatpush.msra.mxu0 0.0
  %75 = vmatpush.msra.mxu0 0.0
  %76 = vmatpush.msra.mxu0 0.0
  %77 = vmatpush.msra.mxu0 0.0
  %78 = vmatpush.msra.mxu0 %v66
  %79 = vmatpush.msra.mxu0 %v62
  %80 = vmatpush.msra.mxu0 %v58
  %81 = vmatpush.msra.mxu0 %v54
  %82 = vmatpush.msra.mxu0 %v50
  %83 = vmatpush.msra.mxu0 %v48
  %84 = vmatpush.msra.mxu0 %v44
  %85 = vmatpush.msra.mxu0 %v40
  %86 = vmatpush.msra.mxu0 %v36
  %87 = vmatmul.f32.gmra.mxu0 %v69
  %v88 = vpop.f32.mrf.mxu0
  %v89 = vadd.f32 0.0, %v88
  %90 = vdwg.mxu0
  %v91 = vld [vmem:[%s2] sm:$0xff]
  %v92 = vld [vmem:[%s3] sm:$0xff]
  %93 = vadd.xlane.f32.xlu0 %v89
  %v94 = vpop.xlane.xlu0 %93
  %v95 = vmul.f32 %v89, %v89
  %96 = vadd.xlane.f32.xlu0 %v95
  %v97 = vpop.xlane.xlu0 %96
  %v98 = vmul.f32 %v94, 0.0078125
  %v99 = vmul.f32 %v97, 0.0078125
  %v100 = vmul.f32 %v98, %v98
  %v101 = vsub.f32 %v99, %v100
  %v102 = vsub.f32 %v89, %v98
  %v103 = vadd.f32 %v101, 1e-05
  %v104 = vrsqrt.pop %v103
  %v105 = vmul.f32 %v104, %v103
  %v106 = vmul.f32 %v105, %v104
  %v107 = vmul.f32 0.5, %v106
  %v108 = vsub.f32 1.5, %v107
  %v109 = vmul.f32 %v104, %v108
  %vm110 = vweird.f32 %v103
  %vm111 = vweird.f32 %v104
  %vm112 = vmor %vm110, %vm111
  %v113 = vsel %vm112, %v104, %v109
  %v114 = vmul.f32 %v113, %v91
  %116 = vset.pattern.permute.xlu0 0
  %117 = vperm.xlu0 %116, %v114
  %v118 = vpop.permute.xlu0 %117
  %v120 = vmul.f32 %v102, %v118
  %122 = vset.pattern.permute.xlu0 0
  %123 = vperm.xlu0 %122, %v92
  %v124 = vpop.permute.xlu0 %123
  %v126 = vadd.f32 %v120, %v124
  %v127 = vmax.f32 %v126, 0.0
  %v128 = vld [vmem:[%s4] sm:$0xff]
  %129 = vrot.lane.b32.xlu0 %v127, 9
  %v130 = vpop.permute.xlu0 %129
  %v131 = vmul.f32 %v130, %v35
  %132 = vrot.lane.b32.xlu0 %v127, 8
  %v133 = vpop.permute.xlu0 %132
  %v134 = vmul.f32 %v133, %v39
  %135 = vrot.lane.b32.xlu0 %v127, 7
  %v136 = vpop.permute.xlu0 %135
  %v137 = vmul.f32 %v136, %v43
  %138 = vrot.lane.b32.xlu0 %v127, 1
  %v139 = vpop.permute.xlu0 %138
  %v140 = vmul.f32 %v139, %v47
  %v141 = vmul.f32 %v127, %v49
  %142 = vrot.lane.b32.xlu0 %v127, 127
  %v143 = vpop.permute.xlu0 %142
  %v144 = vmul.f32 %v143, %v53
  %145 = vrot.lane.b32.xlu0 %v127, 121
  %v146 = vpop.permute.xlu0 %145
  %v147 = vmul.f32 %v146, %v57
  %148 = vrot.lane.b32.xlu0 %v127, 120
  %v149 = vpop.permute.xlu0 %148
  %v150 = vmul.f32 %v149, %v61
  %151 = vrot.lane.b32.xlu0 %v127, 119
  %v152 = vpop.permute.xlu0 %151
  %v153 = vmul.f32 %v152, %v65
  %v155 = vsel %vm67, %v128, 0
  %157 = vmatpush.msra.mxu0 0.0
  %158 = vmatpush.msra.mxu0 0.0
  %159 = vmatpush.msra.mxu0 0.0
  %160 = vmatpush.msra.mxu0 0.0
  %161 = vmatpush.msra.mxu0 0.0
  %162 = vmatpush.msra.mxu0 0.0
  %163 = vmatpush.msra.mxu0 0.0
  %164 = vmatpush.msra.mxu0 %v153
  %165 = vmatpush.msra.mxu0 %v150
  %166 = vmatpush.msra.mxu0 %v147
  %167 = vmatpush.msra.mxu0 %v144
  %168 = vmatpush.msra.mxu0 %v141
  %169 = vmatpush.msra.mxu0 %v140
  %170 = vmatpush.msra.mxu0 %v137
  %171 = vmatpush.msra.mxu0 %v134
  %172 = vmatpush.msra.mxu0 %v131
  %173 = vmatmul.f32.gmra.mxu0 %v155
  %v174 = vpop.f32.mrf.mxu0
  %v175 = vadd.f32 0.0, %v174
  %176 = vdwg.mxu0
  %v177 = vld [vmem:[%s5] sm:$0xff]
  %v178 = vld [vmem:[%s6] sm:$0xff]
  %179 = vadd.xlane.f32.xlu0 %v175
  %v180 = vpop.xlane.xlu0 %179
  %v181 = vmul.f32 %v175, %v175
  %182 = vadd.xlane.f32.xlu0 %v181
  %v183 = vpop.xlane.xlu0 %182
  %v184 = vmul.f32 %v180, 0.0078125
  %v185 = vmul.f32 %v183, 0.0078125
  %v186 = vmul.f32 %v184, %v184
  %v187 = vsub.f32 %v185, %v186
  %v188 = vsub.f32 %v175, %v184
  %v189 = vadd.f32 %v187, 1e-05
  %v190 = vrsqrt.pop %v189
  %v191 = vmul.f32 %v190, %v189
  %v192 = vmul.f32 %v191, %v190
  %v193 = vmul.f32 0.5, %v192
  %v194 = vsub.f32 1.5, %v193
  %v195 = vmul.f32 %v190, %v194
  %vm196 = vweird.f32 %v189
  %vm197 = vweird.f32 %v190
  %vm198 = vmor %vm196, %vm197
  %v199 = vsel %vm198, %v190, %v195
  %v200 = vmul.f32 %v199, %v177
  %202 = vset.pattern.permute.xlu0 0
  %203 = vperm.xlu0 %202, %v200
  %v204 = vpop.permute.xlu0 %203
  %v206 = vmul.f32 %v188, %v204
  %208 = vset.pattern.permute.xlu0 0
  %209 = vperm.xlu0 %208, %v178
  %v210 = vpop.permute.xlu0 %209
  %v212 = vadd.f32 %v206, %v210
  %v213 = vadd.f32 %v212, %v29
  %v214 = vmax.f32 %v213, 0.0
  %215 = vst [vmem:[%s8] sm:$0xff] %v214
  // Predicated region
  $region34: #{_lambda_.3} parent=0 // pred_check
    _
  $region35: #{_lambda_.3} parent=0 // pred_check_branch
    %217 = sbr.rel (0) target = $region37
  $region36: #{_lambda_.3} parent=0 // pred_region
    _
  $region37: #{_lambda_.3} parent=0 // pred_fallthru
    _
  // Predicated region
  $region38: #{_lambda_.3} parent=0 // pred_check
    _
  $region39: #{_lambda_.3} parent=0 // pred_check_branch
    %219 = sbr.rel (0) target = $region41
  $region40: #{_lambda_.3} parent=0 // pred_region
    _
  $region41: #{_lambda_.3} parent=0 // pred_fallthru
    _

</llo_original>
